<compile_context>
chip_gen: v6e
topology: v6e:2x2x1
jax: 0.10.0
libtpu: 0.0.40
codegen_flags: <defaults>
</compile_context>

<pallas_src>
import functools

import jax
import jax.numpy as jnp
from jax import lax
from jax.experimental import pallas as pl
from jax.experimental.pallas import tpu as pltpu


_NEG_BIG = -1e30          # padding value: exp(-1e30 - m) underflows to exactly 0
_FAST_PATH_MAX_N = 1024   # W (<= 4 MiB f32) kept fully VMEM-resident below this
_FAST_PATH_MAX_B = 1024
_MIB = 1 << 20


def _round_up(x, m):
    return (x + m - 1) // m * m


# --------------------------------------------------------------------------
# Fast path: whole W resident in VMEM, single shot (no grid).
# --------------------------------------------------------------------------
def _fast_kernel(x_ref, w_ref, o_ref):
    w = w_ref[...]                                    # (Np, Np) f32
    m = jnp.max(w, axis=0, keepdims=True)             # (1, Np)  column max
    e = jnp.exp(w - m)                                # (Np, Np) EUP
    z = jnp.sum(e, axis=0, keepdims=True)             # (1, Np)  column normalizer
    xs = x_ref[...] / z                               # (Bp, Np) exact divide (small)
    o_ref[...] = lax.dot_general(
        xs, e, dimension_numbers=(((1,), (1,)), ((), ())),
        preferred_element_type=jnp.float32).astype(o_ref.dtype)


def _forward_fast(x_pad, w_pad):
    Bp, Np = x_pad.shape
    vmem = 3 * Np * Np * 4 + 4 * Bp * Np * 4 + 4 * _MIB
    vmem = int(min(max(vmem, 16 * _MIB), 56 * _MIB))
    return pl.pallas_call(
        _fast_kernel,
        out_shape=jax.ShapeDtypeStruct((Bp, Np), jnp.float32),
        compiler_params=pltpu.CompilerParams(vmem_limit_bytes=vmem),
    )(x_pad, w_pad)


# --------------------------------------------------------------------------
# Strip path: stream W once as full-height column strips; fuse stats + matmul.
# grid = (batch tiles [parallel], column strips [arbitrary / reduction]).
# --------------------------------------------------------------------------
def _strip_kernel(x_ref, w_ref, o_ref):
    k = pl.program_id(1)

    @pl.when(k == 0)
    def _zero():
        o_ref[...] = jnp.zeros_like(o_ref)

    w = w_ref[...]                                    # (Np, tk) column strip
    m = jnp.max(w, axis=0, keepdims=True)             # (1, tk)  column max
    e = jnp.exp(w - m)                                # (Np, tk) EUP, computed once
    z = jnp.sum(e, axis=0, keepdims=True)             # (1, tk)  column normalizer
    xs = x_ref[...] / z                               # (tm, tk) exact divide
    # TODO(synk): on v7x verify whether contracting dim 1 of the big rhs puts a
    # full-tile vxpose on the XLU critical path; if so swap operands (output
    # becomes out.T) so the transpose lands on the small xs tile.
    o_ref[...] += lax.dot_general(
        xs, e, dimension_numbers=(((1,), (1,)), ((), ())),
        preferred_element_type=jnp.float32)


def _strip_vmem_bytes(Np, tm, tk):
    w_bytes = 2 * Np * tk * 4        # double-buffered W strip (the HBM stream)
    tmp_bytes = 2 * Np * tk * 4      # live w / exp(w - m) values
    x_bytes = 2 * tm * tk * 4        # double-buffered x column chunk
    out_bytes = 2 * tm * Np * 4      # resident output/accumulator block
    return w_bytes + tmp_bytes + x_bytes + out_bytes


def _pick_strip_tk(Np, tm, cap_bytes=40 * _MIB):
    # Largest lane-dense strip width that keeps the budget under the cap
    # (cap chosen to fit v7x's 64 MiB physical VMEM with headroom).
    for tk in (1024, 512, 256, 128):
        if Np % tk == 0 and _strip_vmem_bytes(Np, tm, tk) <= cap_bytes:
            return tk
    # TODO(synk): for extremely large N even tk=128 may exceed VMEM; would need
    # an additional row-chunked inner loop over the strip.
    return 128


def _forward_strip(x_pad, w_pad, tm, tk):
    Bp, Np = x_pad.shape
    assert Bp % tm == 0 and Np % tk == 0
    vmem = _strip_vmem_bytes(Np, tm, tk) + 6 * _MIB
    vmem = int(min(max(vmem, 32 * _MIB), 56 * _MIB))
    grid = (Bp // tm, Np // tk)
    return pl.pallas_call(
        _strip_kernel,
        out_shape=jax.ShapeDtypeStruct((Bp, Np), jnp.float32),
        grid=grid,
        in_specs=[
            pl.BlockSpec((tm, tk), lambda b, k: (b, k)),   # x column chunk
            pl.BlockSpec((Np, tk), lambda b, k: (0, k)),   # full-height W strip
        ],
        out_specs=pl.BlockSpec((tm, Np), lambda b, k: (b, 0)),
        compiler_params=pltpu.CompilerParams(
            dimension_semantics=("parallel", "arbitrary"),
            vmem_limit_bytes=vmem),
    )(x_pad, w_pad)


# --------------------------------------------------------------------------
# public wrapper
# --------------------------------------------------------------------------
@functools.partial(jax.jit, static_argnames=("force_strip",))
def softmax_markov_chain_forward(walker_states_proba_vector, W, *,
                                 force_strip=False):
    """Pallas TPU forward of SoftmaxMarkovChain: x @ softmax(W, dim=0).T."""
    x = jnp.asarray(walker_states_proba_vector, jnp.float32)
    W = jnp.asarray(W, jnp.float32)

    orig_shape = x.shape
    if x.ndim == 1:
        x = x[None, :]
    elif x.ndim > 2:
        x = x.reshape(-1, x.shape[-1])
    B, N = x.shape
    if W.shape != (N, N):
        raise ValueError(f"W must be ({N}, {N}), got {W.shape}")

    # Pad the state dim to a lane multiple.  Padded W rows are -1e30 so they
    # vanish from every column softmax (exp underflows to 0); padded x columns
    # are 0 so padded columns never contribute; padded output rows are sliced.
    Np = _round_up(N, 128)
    if Np != N:
        W = jnp.pad(W, ((0, Np - N), (0, Np - N)), constant_values=_NEG_BIG)
        x = jnp.pad(x, ((0, 0), (0, Np - N)))

    use_fast = ((not force_strip)
                and Np <= _FAST_PATH_MAX_N and B <= _FAST_PATH_MAX_B)
    if use_fast:
        Bp = _round_up(B, 8)
        if Bp != B:
            x = jnp.pad(x, ((0, Bp - B), (0, 0)))
        out = _forward_fast(x, W)
    else:
        tm = min(256, _round_up(B, 8))
        Bp = _round_up(B, tm)
        if Bp != B:
            x = jnp.pad(x, ((0, Bp - B), (0, 0)))
        tk = _pick_strip_tk(Np, tm)
        out = _forward_strip(x, W, tm, tk)

    out = out[:B, :N]
    return out.reshape(orig_shape[:-1] + (N,))


# --------------------------------------------------------------------------
# demo / self-test
# --------------------------------------------------------------------------
if __name__ == "__main__":
    key = jax.random.PRNGKey(0)
    k1, k2, k3, k4, k5, k6 = jax.random.split(key, 6)

    def reference(x, W):
        P = jax.nn.softmax(jnp.asarray(W, jnp.float32), axis=0)
        return jnp.asarray(x, jnp.float32) @ P.T

    def check(name, out, ref, rtol=2e-3, atol=1e-5):
        out = jax.block_until_ready(out)
        if out.shape != ref.shape:
            raise AssertionError(f"{name}: shape {out.shape} != {ref.shape}")
        if not jnp.allclose(out, ref, rtol=rtol, atol=atol):
            err = float(jnp.max(jnp.abs(out - ref)))
            raise AssertionError(f"{name}: mismatch vs reference, max abs err = {err}")

    # 1) fast path (W fully VMEM-resident): N=256 Markov states, batch of 8.
    N, B = 256, 8
    W = jax.random.normal(k1, (N, N), dtype=jnp.float32)
    x = jax.random.uniform(k2, (B, N), dtype=jnp.float32)
    x = x / jnp.sum(x, axis=-1, keepdims=True)          # probability row-vectors
    check("fast", softmax_markov_chain_forward(x, W), reference(x, W))

    # 2) ragged N (lane padding) + single 1-D probability vector.
    N2 = 200
    W2 = jax.random.normal(k3, (N2, N2), dtype=jnp.float32)
    x2 = jax.random.uniform(k4, (N2,), dtype=jnp.float32)
    x2 = x2 / jnp.sum(x2)
    check("ragged", softmax_markov_chain_forward(x2, W2), reference(x2, W2))

    # 3) strip path (single pass over W in column strips) forced at a small
    #    size so both kernels are exercised in this demo (grid has 3 strips).
    N3, B3 = 384, 16
    W3 = jax.random.normal(k5, (N3, N3), dtype=jnp.float32)
    x3 = jax.random.uniform(k6, (B3, N3), dtype=jnp.float32)
    x3 = x3 / jnp.sum(x3, axis=-1, keepdims=True)
    check("strip", softmax_markov_chain_forward(x3, W3, force_strip=True),
          reference(x3, W3))

    print("KERNEL_OK")
</pallas_src>

<mosaic_0001>
module attributes {stable_mosaic.version = 11 : i64} {
  func.func @_fast_kernel(%arg0: memref<8x256xf32, #tpu.memory_space<vmem>>, %arg1: memref<256x256xf32, #tpu.memory_space<vmem>>, %arg2: memref<8x256xf32, #tpu.memory_space<vmem>>) attributes {dimension_semantics = [], scalar_prefetch = 0 : i64, scratch_operands = 0 : i64, tpu.core_type = #tpu.core_type<tc>} {
    %c0 = arith.constant 0 : index
    %c0_0 = arith.constant 0 : index
    %0 = vector.load %arg1[%c0, %c0_0] : memref<256x256xf32, #tpu.memory_space<vmem>>, vector<256x256xf32>
    %cst = arith.constant dense<0xFF800000> : vector<256xf32>
    %1 = vector.multi_reduction <maximumf>, %0, %cst [0] : vector<256x256xf32> to vector<256xf32>
    %2 = vector.shape_cast %1 : vector<256xf32> to vector<1x256xf32>
    %3 = vector.broadcast %2 : vector<1x256xf32> to vector<256x256xf32>
    %4 = arith.subf %0, %3 : vector<256x256xf32>
    %5 = math.exp %4 : vector<256x256xf32>
    %cst_1 = arith.constant dense<0.000000e+00> : vector<256xf32>
    %6 = vector.multi_reduction <add>, %5, %cst_1 [0] : vector<256x256xf32> to vector<256xf32>
    %7 = vector.shape_cast %6 : vector<256xf32> to vector<1x256xf32>
    %c0_2 = arith.constant 0 : index
    %c0_3 = arith.constant 0 : index
    %8 = vector.load %arg0[%c0_2, %c0_3] : memref<8x256xf32, #tpu.memory_space<vmem>>, vector<8x256xf32>
    %9 = vector.broadcast %7 : vector<1x256xf32> to vector<8x256xf32>
    %10 = arith.divf %8, %9 : vector<8x256xf32>
    %cst_4 = arith.constant dense<0.000000e+00> : vector<8x256xf32>
    %11 = tpu.matmul %10, %5, %cst_4 {dimension_numbers = #tpu.dot_dimension_numbers<[1], [1], [0], [0], [0, 0, 1, 0], [], []>} : vector<8x256xf32>, vector<256x256xf32>, vector<8x256xf32> -> vector<8x256xf32>
    %c0_5 = arith.constant 0 : index
    %c0_6 = arith.constant 0 : index
    %12 = vector.load %arg2[%c0_5, %c0_6] : memref<8x256xf32, #tpu.memory_space<vmem>>, vector<8x256xf32>
    tpu.vector_store %arg2[%c0_5, %c0_6], %11 {strides = array<i32>} : memref<8x256xf32, #tpu.memory_space<vmem>>, vector<8x256xf32>,
    return
  }
}

</mosaic_0001>

<llo_original>
// kernel: softmax_markov_chain_forward.1
$region0: #{softmax_markov_chain_forward.1}
  #allocation0 [shape = 'u32[]', space=smem, size = 0x4, offset = 0x4, fixed_abs, tag = 'smem constant byte address 0x4 - core index']
  #allocation1 [shape = 'u32[144,128]{1,0:T(1,128)}', space=vmem, size = 0x12000, scoped, tag = 'internal scratch']
  %s0 = inlined_call_operand.hbm [shape: f32[8,256], index: 0, kind: input, shape index: {}]
  %s1 = inlined_call_operand.hbm [shape: f32[256,256], index: 1, kind: input, shape index: {}]
  %s2 = inlined_call_operand.hbm [shape: f32[8,256], index: 2, kind: output, shape index: {}]
  %s3 = sld [smem:[#allocation0]]
  $region26: #{softmax_markov_chain_forward.1} parent=0
    _
  %s5 = ssub.s32 1, %s3
  %s6 = scalar_select 0, %s5, %s3
  $region1: #{softmax_markov_chain_forward.1} parent=0
    #allocation2 [shape = 'u8[8192]{0}', space=vmem, size = 0x2000, scoped, tag = 'input window, operand 0, single buffered']
    #allocation3 [shape = 's32[1]{0}', space=sflag, size = 0x4, scoped, tag = 'scoped memory for softmax_markov_chain_forward.1']
    #allocation4 [shape = 's32[1]{0}', space=sflag, size = 0x4, scoped, tag = 'scoped memory for softmax_markov_chain_forward.1']
    #allocation5 [shape = 'u8[262144]{0}', space=vmem, size = 0x40000, scoped, tag = 'input window, operand 1, single buffered']
    #allocation6 [shape = 's32[1]{0}', space=sflag, size = 0x4, scoped, tag = 'scoped memory for softmax_markov_chain_forward.1']
    #allocation7 [shape = 'u8[8192]{0}', space=vmem, size = 0x2000, scoped, tag = 'output window, operand 0, single buffered']
    %7 = vsyncpa [#allocation3], 0
    %8 = vsyncpa [#allocation6], 0
    %9 = vsyncpa [#allocation4], 0
    // Predicated region
    $region2: #{softmax_markov_chain_forward.1} parent=1 // pred_check
      _
    $region3: #{softmax_markov_chain_forward.1} parent=1 // pred_check_branch
      %11 = sbr.rel (0) target = $region5
    $region4: #{softmax_markov_chain_forward.1} parent=1 // pred_region
      %s13 = ssub.s32 256, 256
      %14 = vsyncadd [#allocation3], %s13
      %s16 = sshll.u32 [#allocation2], 4
      %s17 = int_to_ptr.vmem [resolvable:$true] %s16
      %19 = dma.hbm_to_vmem [thread:$0]  %s0, 256, %s17, [#allocation3]
    $region5: #{softmax_markov_chain_forward.1} parent=1 // pred_fallthru
      _
    // Predicated region
    $region6: #{softmax_markov_chain_forward.1} parent=1 // pred_check
      _
    $region7: #{softmax_markov_chain_forward.1} parent=1 // pred_check_branch
      %21 = sbr.rel (0) target = $region9
    $region8: #{softmax_markov_chain_forward.1} parent=1 // pred_region
      %s23 = ssub.s32 8192, 8192
      %24 = vsyncadd [#allocation6], %s23
      %s25 = sshll.u32 [#allocation5], 4
      %s26 = int_to_ptr.vmem [resolvable:$true] %s25
      %31 = dma.hbm_to_vmem [thread:$0]  %s1, 8192, %s26, [#allocation6], 256, 256, 16
    $region9: #{softmax_markov_chain_forward.1} parent=1 // pred_fallthru
      _
    // Predicated region
    $region10: #{softmax_markov_chain_forward.1} parent=1 // pred_check
      _
    $region11: #{softmax_markov_chain_forward.1} parent=1 // pred_check_branch
      %33 = sbr.rel (0) target = $region13
    $region12: #{softmax_markov_chain_forward.1} parent=1 // pred_region
      %34 = dma.done [#allocation3], 256
    $region13: #{softmax_markov_chain_forward.1} parent=1 // pred_fallthru
      _
    // Predicated region
    $region14: #{softmax_markov_chain_forward.1} parent=1 // pred_check
      _
    $region15: #{softmax_markov_chain_forward.1} parent=1 // pred_check_branch
      %36 = sbr.rel (0) target = $region17
    $region16: #{softmax_markov_chain_forward.1} parent=1 // pred_region
      %37 = dma.done [#allocation6], 8192
    $region17: #{softmax_markov_chain_forward.1} parent=1 // pred_fallthru
      _
    %v38 = vld [vmem:[#allocation5] sm:$0xff]
    %v39 = vld [vmem:[#allocation5 + $0x8] sm:$0xff]
    %v40 = vld [vmem:[#allocation5 + $0x10] sm:$0xff]
    %v41 = vld [vmem:[#allocation5 + $0x18] sm:$0xff]
    %v42 = vld [vmem:[#allocation5 + $0x20] sm:$0xff]
    %v43 = vld [vmem:[#allocation5 + $0x28] sm:$0xff]
    %v44 = vld [vmem:[#allocation5 + $0x30] sm:$0xff]
    %v45 = vld [vmem:[#allocation5 + $0x38] sm:$0xff]
    %v46 = vld [vmem:[#allocation5 + $0x40] sm:$0xff]
    %v47 = vld [vmem:[#allocation5 + $0x48] sm:$0xff]
    %v48 = vld [vmem:[#allocation5 + $0x50] sm:$0xff]
    %v49 = vld [vmem:[#allocation5 + $0x58] sm:$0xff]
    %v50 = vld [vmem:[#allocation5 + $0x60] sm:$0xff]
    %v51 = vld [vmem:[#allocation5 + $0x68] sm:$0xff]
    %v52 = vld [vmem:[#allocation5 + $0x70] sm:$0xff]
    %v53 = vld [vmem:[#allocation5 + $0x78] sm:$0xff]
    %v54 = vld [vmem:[#allocation5 + $0x80] sm:$0xff]
    %v55 = vld [vmem:[#allocation5 + $0x88] sm:$0xff]
    %v56 = vld [vmem:[#allocation5 + $0x90] sm:$0xff]
    %v57 = vld [vmem:[#allocation5 + $0x98] sm:$0xff]
    %v58 = vld [vmem:[#allocation5 + $0xa0] sm:$0xff]
    %v59 = vld [vmem:[#allocation5 + $0xa8] sm:$0xff]
    %v60 = vld [vmem:[#allocation5 + $0xb0] sm:$0xff]
    %v61 = vld [vmem:[#allocation5 + $0xb8] sm:$0xff]
    %v62 = vld [vmem:[#allocation5 + $0xc0] sm:$0xff]
    %v63 = vld [vmem:[#allocation5 + $0xc8] sm:$0xff]
    %v64 = vld [vmem:[#allocation5 + $0xd0] sm:$0xff]
    %v65 = vld [vmem:[#allocation5 + $0xd8] sm:$0xff]
    %v66 = vld [vmem:[#allocation5 + $0xe0] sm:$0xff]
    %v67 = vld [vmem:[#allocation5 + $0xe8] sm:$0xff]
    %v68 = vld [vmem:[#allocation5 + $0xf0] sm:$0xff]
    %v69 = vld [vmem:[#allocation5 + $0xf8] sm:$0xff]
    %v70 = vld [vmem:[#allocation5 + $0x100] sm:$0xff]
    %v71 = vld [vmem:[#allocation5 + $0x108] sm:$0xff]
    %v72 = vld [vmem:[#allocation5 + $0x110] sm:$0xff]
    %v73 = vld [vmem:[#allocation5 + $0x118] sm:$0xff]
    %v74 = vld [vmem:[#allocation5 + $0x120] sm:$0xff]
    %v75 = vld [vmem:[#allocation5 + $0x128] sm:$0xff]
    %v76 = vld [vmem:[#allocation5 + $0x130] sm:$0xff]
    %v77 = vld [vmem:[#allocation5 + $0x138] sm:$0xff]
    %v78 = vld [vmem:[#allocation5 + $0x140] sm:$0xff]
    %v79 = vld [vmem:[#allocation5 + $0x148] sm:$0xff]
    %v80 = vld [vmem:[#allocation5 + $0x150] sm:$0xff]
    %v81 = vld [vmem:[#allocation5 + $0x158] sm:$0xff]
    %v82 = vld [vmem:[#allocation5 + $0x160] sm:$0xff]
    %v83 = vld [vmem:[#allocation5 + $0x168] sm:$0xff]
    %v84 = vld [vmem:[#allocation5 + $0x170] sm:$0xff]
    %v85 = vld [vmem:[#allocation5 + $0x178] sm:$0xff]
    %v86 = vld [vmem:[#allocation5 + $0x180] sm:$0xff]
    %v87 = vld [vmem:[#allocation5 + $0x188] sm:$0xff]
    %v88 = vld [vmem:[#allocation5 + $0x190] sm:$0xff]
    %v89 = vld [vmem:[#allocation5 + $0x198] sm:$0xff]
    %v90 = vld [vmem:[#allocation5 + $0x1a0] sm:$0xff]
    %v91 = vld [vmem:[#allocation5 + $0x1a8] sm:$0xff]
    %v92 = vld [vmem:[#allocation5 + $0x1b0] sm:$0xff]
    %v93 = vld [vmem:[#allocation5 + $0x1b8] sm:$0xff]
    %v94 = vld [vmem:[#allocation5 + $0x1c0] sm:$0xff]
    %v95 = vld [vmem:[#allocation5 + $0x1c8] sm:$0xff]
    %v96 = vld [vmem:[#allocation5 + $0x1d0] sm:$0xff]
    %v97 = vld [vmem:[#allocation5 + $0x1d8] sm:$0xff]
    %v98 = vld [vmem:[#allocation5 + $0x1e0] sm:$0xff]
    %v99 = vld [vmem:[#allocation5 + $0x1e8] sm:$0xff]
    %v100 = vld [vmem:[#allocation5 + $0x1f0] sm:$0xff]
    %v101 = vld [vmem:[#allocation5 + $0x1f8] sm:$0xff]
    %v102 = vmax.f32 %v38, %v42
    %v103 = vmax.f32 %v40, %v44
    %v104 = vmax.f32 %v102, %v46
    %v105 = vmax.f32 %v103, %v48
    %v106 = vmax.f32 %v104, %v50
    %v107 = vmax.f32 %v105, %v52
    %v108 = vmax.f32 %v106, %v54
    %v109 = vmax.f32 %v107, %v56
    %v110 = vmax.f32 %v108, %v58
    %v111 = vmax.f32 %v109, %v60
    %v112 = vmax.f32 %v110, %v62
    %v113 = vmax.f32 %v111, %v64
    %v114 = vmax.f32 %v112, %v66
    %v115 = vmax.f32 %v113, %v68
    %v116 = vmax.f32 %v114, %v70
    %v117 = vmax.f32 %v115, %v72
    %v118 = vmax.f32 %v116, %v74
    %v119 = vmax.f32 %v117, %v76
    %v120 = vmax.f32 %v118, %v78
    %v121 = vmax.f32 %v119, %v80
    %v122 = vmax.f32 %v120, %v82
    %v123 = vmax.f32 %v121, %v84
    %v124 = vmax.f32 %v122, %v86
    %v125 = vmax.f32 %v123, %v88
    %v126 = vmax.f32 %v124, %v90
    %v127 = vmax.f32 %v125, %v92
    %v128 = vmax.f32 %v126, %v94
    %v129 = vmax.f32 %v127, %v96
    %v130 = vmax.f32 %v128, %v98
    %v131 = vmax.f32 %v129, %v100
    %v132 = vmax.f32 %v130, %v131
    %v133 = vrot.slane %v132, 4
    %v134 = vmax.f32 %v132, %v133
    %v135 = vrot.slane %v134, 2
    %v136 = vmax.f32 %v134, %v135
    %v137 = vrot.slane %v136, 1
    %v138 = vmax.f32 %v136, %v137
    %v139 = vmax.f32 %v39, %v43
    %v140 = vmax.f32 %v41, %v45
    %v141 = vmax.f32 %v139, %v47
    %v142 = vmax.f32 %v140, %v49
    %v143 = vmax.f32 %v141, %v51
    %v144 = vmax.f32 %v142, %v53
    %v145 = vmax.f32 %v143, %v55
    %v146 = vmax.f32 %v144, %v57
    %v147 = vmax.f32 %v145, %v59
    %v148 = vmax.f32 %v146, %v61
    %v149 = vmax.f32 %v147, %v63
    %v150 = vmax.f32 %v148, %v65
    %v151 = vmax.f32 %v149, %v67
    %v152 = vmax.f32 %v150, %v69
    %v153 = vmax.f32 %v151, %v71
    %v154 = vmax.f32 %v152, %v73
    %v155 = vmax.f32 %v153, %v75
    %v156 = vmax.f32 %v154, %v77
    %v157 = vmax.f32 %v155, %v79
    %v158 = vmax.f32 %v156, %v81
    %v159 = vmax.f32 %v157, %v83
    %v160 = vmax.f32 %v158, %v85
    %v161 = vmax.f32 %v159, %v87
    %v162 = vmax.f32 %v160, %v89
    %v163 = vmax.f32 %v161, %v91
    %v164 = vmax.f32 %v162, %v93
    %v165 = vmax.f32 %v163, %v95
    %v166 = vmax.f32 %v164, %v97
    %v167 = vmax.f32 %v165, %v99
    %v168 = vmax.f32 %v166, %v101
    %v169 = vmax.f32 %v167, %v168
    %v170 = vrot.slane %v169, 4
    %v171 = vmax.f32 %v169, %v170
    %v172 = vrot.slane %v171, 2
    %v173 = vmax.f32 %v171, %v172
    %v174 = vrot.slane %v173, 1
    %v175 = vmax.f32 %v173, %v174
    %v176 = vsub.f32 %v38, %v138
    %v177 = vsub.f32 %v39, %v175
    %v178 = vsub.f32 %v40, %v138
    %v179 = vsub.f32 %v41, %v175
    %v180 = vsub.f32 %v42, %v138
    %v181 = vsub.f32 %v43, %v175
    %v182 = vsub.f32 %v44, %v138
    %v183 = vsub.f32 %v45, %v175
    %v184 = vsub.f32 %v46, %v138
    %v185 = vsub.f32 %v47, %v175
    %v186 = vsub.f32 %v48, %v138
    %v187 = vsub.f32 %v49, %v175
    %v188 = vsub.f32 %v50, %v138
    %v189 = vsub.f32 %v51, %v175
    %v190 = vsub.f32 %v52, %v138
    %v191 = vsub.f32 %v53, %v175
    %v192 = vsub.f32 %v54, %v138
    %v193 = vsub.f32 %v55, %v175
    %v194 = vsub.f32 %v56, %v138
    %v195 = vsub.f32 %v57, %v175
    %v196 = vsub.f32 %v58, %v138
    %v197 = vsub.f32 %v59, %v175
    %v198 = vsub.f32 %v60, %v138
    %v199 = vsub.f32 %v61, %v175
    %v200 = vsub.f32 %v62, %v138
    %v201 = vsub.f32 %v63, %v175
    %v202 = vsub.f32 %v64, %v138
    %v203 = vsub.f32 %v65, %v175
    %v204 = vsub.f32 %v66, %v138
    %v205 = vsub.f32 %v67, %v175
    %v206 = vsub.f32 %v68, %v138
    %v207 = vsub.f32 %v69, %v175
    %v208 = vsub.f32 %v70, %v138
    %v209 = vsub.f32 %v71, %v175
    %v210 = vsub.f32 %v72, %v138
    %v211 = vsub.f32 %v73, %v175
    %v212 = vsub.f32 %v74, %v138
    %v213 = vsub.f32 %v75, %v175
    %v214 = vsub.f32 %v76, %v138
    %v215 = vsub.f32 %v77, %v175
    %v216 = vsub.f32 %v78, %v138
    %v217 = vsub.f32 %v79, %v175
    %v218 = vsub.f32 %v80, %v138
    %v219 = vsub.f32 %v81, %v175
    %v220 = vsub.f32 %v82, %v138
    %v221 = vsub.f32 %v83, %v175
    %v222 = vsub.f32 %v84, %v138
    %v223 = vsub.f32 %v85, %v175
    %v224 = vsub.f32 %v86, %v138
    %v225 = vsub.f32 %v87, %v175
    %v226 = vsub.f32 %v88, %v138
    %v227 = vsub.f32 %v89, %v175
    %v228 = vsub.f32 %v90, %v138
    %v229 = vsub.f32 %v91, %v175
    %v230 = vsub.f32 %v92, %v138
    %v231 = vsub.f32 %v93, %v175
    %v232 = vsub.f32 %v94, %v138
    %v233 = vsub.f32 %v95, %v175
    %v234 = vsub.f32 %v96, %v138
    %v235 = vsub.f32 %v97, %v175
    %v236 = vsub.f32 %v98, %v138
    %v237 = vsub.f32 %v99, %v175
    %v238 = vsub.f32 %v100, %v138
    %v239 = vsub.f32 %v101, %v175
    %v240 = vmul.f32 %v176, 1.442695
    %v241 = vpow.pop %v240
    %v242 = vmul.f32 %v177, 1.442695
    %v243 = vpow.pop %v242
    %v244 = vmul.f32 %v178, 1.442695
    %v245 = vpow.pop %v244
    %v246 = vmul.f32 %v179, 1.442695
    %v247 = vpow.pop %v246
    %v248 = vmul.f32 %v180, 1.442695
    %v249 = vpow.pop %v248
    %v250 = vmul.f32 %v181, 1.442695
    %v251 = vpow.pop %v250
    %v252 = vmul.f32 %v182, 1.442695
    %v253 = vpow.pop %v252
    %v254 = vmul.f32 %v183, 1.442695
    %v255 = vpow.pop %v254
    %v256 = vmul.f32 %v184, 1.442695
    %v257 = vpow.pop %v256
    %v258 = vmul.f32 %v185, 1.442695
    %v259 = vpow.pop %v258
    %v260 = vmul.f32 %v186, 1.442695
    %v261 = vpow.pop %v260
    %v262 = vmul.f32 %v187, 1.442695
    %v263 = vpow.pop %v262
    %v264 = vmul.f32 %v188, 1.442695
    %v265 = vpow.pop %v264
    %v266 = vmul.f32 %v189, 1.442695
    %v267 = vpow.pop %v266
    %v268 = vmul.f32 %v190, 1.442695
    %v269 = vpow.pop %v268
    %v270 = vmul.f32 %v191, 1.442695
    %v271 = vpow.pop %v270
    %v272 = vmul.f32 %v192, 1.442695
    %v273 = vpow.pop %v272
    %v274 = vmul.f32 %v193, 1.442695
    %v275 = vpow.pop %v274
    %v276 = vmul.f32 %v194, 1.442695
    %v277 = vpow.pop %v276
    %v278 = vmul.f32 %v195, 1.442695
    %v279 = vpow.pop %v278
    %v280 = vmul.f32 %v196, 1.442695
    %v281 = vpow.pop %v280
    %v282 = vmul.f32 %v197, 1.442695
    %v283 = vpow.pop %v282
    %v284 = vmul.f32 %v198, 1.442695
    %v285 = vpow.pop %v284
    %v286 = vmul.f32 %v199, 1.442695
    %v287 = vpow.pop %v286
    %v288 = vmul.f32 %v200, 1.442695
    %v289 = vpow.pop %v288
    %v290 = vmul.f32 %v201, 1.442695
    %v291 = vpow.pop %v290
    %v292 = vmul.f32 %v202, 1.442695
    %v293 = vpow.pop %v292
    %v294 = vmul.f32 %v203, 1.442695
    %v295 = vpow.pop %v294
    %v296 = vmul.f32 %v204, 1.442695
    %v297 = vpow.pop %v296
    %v298 = vmul.f32 %v205, 1.442695
    %v299 = vpow.pop %v298
    %v300 = vmul.f32 %v206, 1.442695
    %v301 = vpow.pop %v300
    %v302 = vmul.f32 %v207, 1.442695
    %v303 = vpow.pop %v302
    %v304 = vmul.f32 %v208, 1.442695
    %v305 = vpow.pop %v304
    %v306 = vmul.f32 %v209, 1.442695
    %v307 = vpow.pop %v306
    %v308 = vmul.f32 %v210, 1.442695
    %v309 = vpow.pop %v308
    %v310 = vmul.f32 %v211, 1.442695
    %v311 = vpow.pop %v310
    %v312 = vmul.f32 %v212, 1.442695
    %v313 = vpow.pop %v312
    %v314 = vmul.f32 %v213, 1.442695
    %v315 = vpow.pop %v314
    %v316 = vmul.f32 %v214, 1.442695
    %v317 = vpow.pop %v316
    %v318 = vmul.f32 %v215, 1.442695
    %v319 = vpow.pop %v318
    %v320 = vmul.f32 %v216, 1.442695
    %v321 = vpow.pop %v320
    %v322 = vmul.f32 %v217, 1.442695
    %v323 = vpow.pop %v322
    %v324 = vmul.f32 %v218, 1.442695
    %v325 = vpow.pop %v324
    %v326 = vmul.f32 %v219, 1.442695
    %v327 = vpow.pop %v326
    %v328 = vmul.f32 %v220, 1.442695
    %v329 = vpow.pop %v328
    %v330 = vmul.f32 %v221, 1.442695
    %v331 = vpow.pop %v330
    %v332 = vmul.f32 %v222, 1.442695
    %v333 = vpow.pop %v332
    %v334 = vmul.f32 %v223, 1.442695
    %v335 = vpow.pop %v334
    %v336 = vmul.f32 %v224, 1.442695
    %v337 = vpow.pop %v336
    %v338 = vmul.f32 %v225, 1.442695
    %v339 = vpow.pop %v338
    %v340 = vmul.f32 %v226, 1.442695
    %v341 = vpow.pop %v340
    %v342 = vmul.f32 %v227, 1.442695
    %v343 = vpow.pop %v342
    %v344 = vmul.f32 %v228, 1.442695
    %v345 = vpow.pop %v344
    %v346 = vmul.f32 %v229, 1.442695
    %v347 = vpow.pop %v346
    %v348 = vmul.f32 %v230, 1.442695
    %v349 = vpow.pop %v348
    %v350 = vmul.f32 %v231, 1.442695
    %v351 = vpow.pop %v350
    %v352 = vmul.f32 %v232, 1.442695
    %v353 = vpow.pop %v352
    %v354 = vmul.f32 %v233, 1.442695
    %v355 = vpow.pop %v354
    %v356 = vmul.f32 %v234, 1.442695
    %v357 = vpow.pop %v356
    %v358 = vmul.f32 %v235, 1.442695
    %v359 = vpow.pop %v358
    %v360 = vmul.f32 %v236, 1.442695
    %v361 = vpow.pop %v360
    %v362 = vmul.f32 %v237, 1.442695
    %v363 = vpow.pop %v362
    %v364 = vmul.f32 %v238, 1.442695
    %v365 = vpow.pop %v364
    %v366 = vmul.f32 %v239, 1.442695
    %v367 = vpow.pop %v366
    %v368 = vadd.f32 %v241, %v245
    %v369 = vadd.f32 %v368, %v249
    %v370 = vadd.f32 %v369, %v253
    %v371 = vadd.f32 %v370, %v257
    %v372 = vadd.f32 %v371, %v261
    %v373 = vadd.f32 %v372, %v265
    %v374 = vadd.f32 %v373, %v269
    %v375 = vadd.f32 %v374, %v273
    %v376 = vadd.f32 %v375, %v277
    %v377 = vadd.f32 %v376, %v281
    %v378 = vadd.f32 %v377, %v285
    %v379 = vadd.f32 %v378, %v289
    %v380 = vadd.f32 %v379, %v293
    %v381 = vadd.f32 %v380, %v297
    %v382 = vadd.f32 %v381, %v301
    %v383 = vadd.f32 %v382, %v305
    %v384 = vadd.f32 %v383, %v309
    %v385 = vadd.f32 %v384, %v313
    %v386 = vadd.f32 %v385, %v317
    %v387 = vadd.f32 %v386, %v321
    %v388 = vadd.f32 %v387, %v325
    %v389 = vadd.f32 %v388, %v329
    %v390 = vadd.f32 %v389, %v333
    %v391 = vadd.f32 %v390, %v337
    %v392 = vadd.f32 %v391, %v341
    %v393 = vadd.f32 %v392, %v345
    %v394 = vadd.f32 %v393, %v349
    %v395 = vadd.f32 %v394, %v353
    %v396 = vadd.f32 %v395, %v357
    %v397 = vadd.f32 %v396, %v361
    %v398 = vadd.f32 %v397, %v365
    %v399 = vrot.slane %v398, 4
    %v400 = vadd.f32 %v398, %v399
    %v401 = vrot.slane %v400, 2
    %v402 = vadd.f32 %v400, %v401
    %v403 = vrot.slane %v402, 1
    %v404 = vadd.f32 %v402, %v403
    %v405 = vadd.f32 %v243, %v247
    %v406 = vadd.f32 %v405, %v251
    %v407 = vadd.f32 %v406, %v255
    %v408 = vadd.f32 %v407, %v259
    %v409 = vadd.f32 %v408, %v263
    %v410 = vadd.f32 %v409, %v267
    %v411 = vadd.f32 %v410, %v271
    %v412 = vadd.f32 %v411, %v275
    %v413 = vadd.f32 %v412, %v279
    %v414 = vadd.f32 %v413, %v283
    %v415 = vadd.f32 %v414, %v287
    %v416 = vadd.f32 %v415, %v291
    %v417 = vadd.f32 %v416, %v295
    %v418 = vadd.f32 %v417, %v299
    %v419 = vadd.f32 %v418, %v303
    %v420 = vadd.f32 %v419, %v307
    %v421 = vadd.f32 %v420, %v311
    %v422 = vadd.f32 %v421, %v315
    %v423 = vadd.f32 %v422, %v319
    %v424 = vadd.f32 %v423, %v323
    %v425 = vadd.f32 %v424, %v327
    %v426 = vadd.f32 %v425, %v331
    %v427 = vadd.f32 %v426, %v335
    %v428 = vadd.f32 %v427, %v339
    %v429 = vadd.f32 %v428, %v343
    %v430 = vadd.f32 %v429, %v347
    %v431 = vadd.f32 %v430, %v351
    %v432 = vadd.f32 %v431, %v355
    %v433 = vadd.f32 %v432, %v359
    %v434 = vadd.f32 %v433, %v363
    %v435 = vadd.f32 %v434, %v367
    %v436 = vrot.slane %v435, 4
    %v437 = vadd.f32 %v435, %v436
    %v438 = vrot.slane %v437, 2
    %v439 = vadd.f32 %v437, %v438
    %v440 = vrot.slane %v439, 1
    %v441 = vadd.f32 %v439, %v440
    %v442 = vld [vmem:[#allocation2] sm:$0xff]
    %v443 = vld [vmem:[#allocation2 + $0x8] sm:$0xff]
    %v444 = vrcp.pop %v404
    %v445 = vmul.f32 %v442, %v444
    %v446 = vrcp.pop %v441
    %v447 = vmul.f32 %v443, %v446
    %448 = vmatprep.subr.mxu0 %v303
    %449 = vmatpush1.xpose.msra.mxu0 %v301
    %450 = vmatprep.subr.mxu0 %v299
    %451 = vmatpush1.xpose.msra.mxu0 %v297
    %452 = vmatprep.subr.mxu0 %v295
    %453 = vmatpush1.xpose.msra.mxu0 %v293
    %454 = vmatprep.subr.mxu0 %v291
    %455 = vmatpush1.xpose.msra.mxu0 %v289
    %456 = vmatprep.subr.mxu0 %v287
    %457 = vmatpush1.xpose.msra.mxu0 %v285
    %458 = vmatprep.subr.mxu0 %v283
    %459 = vmatpush1.xpose.msra.mxu0 %v281
    %460 = vmatprep.subr.mxu0 %v279
    %461 = vmatpush1.xpose.msra.mxu0 %v277
    %462 = vmatprep.subr.mxu0 %v275
    %463 = vmatpush1.xpose.msra.mxu0 %v273
    %464 = vmatprep.subr.mxu0 %v271
    %465 = vmatpush1.xpose.msra.mxu0 %v269
    %466 = vmatprep.subr.mxu0 %v267
    %467 = vmatpush1.xpose.msra.mxu0 %v265
    %468 = vmatprep.subr.mxu0 %v263
    %469 = vmatpush1.xpose.msra.mxu0 %v261
    %470 = vmatprep.subr.mxu0 %v259
    %471 = vmatpush1.xpose.msra.mxu0 %v257
    %472 = vmatprep.subr.mxu0 %v255
    %473 = vmatpush1.xpose.msra.mxu0 %v253
    %474 = vmatprep.subr.mxu0 %v251
    %475 = vmatpush1.xpose.msra.mxu0 %v249
    %476 = vmatprep.subr.mxu0 %v247
    %477 = vmatpush1.xpose.msra.mxu0 %v245
    %478 = vmatprep.subr.mxu0 %v243
    %479 = vmatpush1.xpose.msra.mxu0 %v241
    %480 = vmatprep.subr.mxu0 %v367
    %481 = vmatpush2.xpose.msra.mxu0 %v365
    %482 = vmatprep.subr.mxu0 %v363
    %483 = vmatpush2.xpose.msra.mxu0 %v361
    %484 = vmatprep.subr.mxu0 %v359
    %485 = vmatpush2.xpose.msra.mxu0 %v357
    %486 = vmatprep.subr.mxu0 %v355
    %487 = vmatpush2.xpose.msra.mxu0 %v353
    %488 = vmatprep.subr.mxu0 %v351
    %489 = vmatpush2.xpose.msra.mxu0 %v349
    %490 = vmatprep.subr.mxu0 %v347
    %491 = vmatpush2.xpose.msra.mxu0 %v345
    %492 = vmatprep.subr.mxu0 %v343
    %493 = vmatpush2.xpose.msra.mxu0 %v341
    %494 = vmatprep.subr.mxu0 %v339
    %495 = vmatpush2.xpose.msra.mxu0 %v337
    %496 = vmatprep.subr.mxu0 %v335
    %497 = vmatpush2.xpose.msra.mxu0 %v333
    %498 = vmatprep.subr.mxu0 %v331
    %499 = vmatpush2.xpose.msra.mxu0 %v329
    %500 = vmatprep.subr.mxu0 %v327
    %501 = vmatpush2.xpose.msra.mxu0 %v325
    %502 = vmatprep.subr.mxu0 %v323
    %503 = vmatpush2.xpose.msra.mxu0 %v321
    %504 = vmatprep.subr.mxu0 %v319
    %505 = vmatpush2.xpose.msra.mxu0 %v317
    %506 = vmatprep.subr.mxu0 %v315
    %507 = vmatpush2.xpose.msra.mxu0 %v313
    %508 = vmatprep.subr.mxu0 %v311
    %509 = vmatpush2.xpose.msra.mxu0 %v309
    %510 = vmatprep.subr.mxu0 %v307
    %511 = vmatpush2.xpose.msra.mxu0 %v305
    %512 = vmatprep.mubr.f32.mxu0 %v447
    %513 = vmatmul.mubr.f32.gmra.mxu0 %v445
    %v514 = vpop.f32.mrf.mxu0
    %v515 = vadd.f32 0.0, %v514
    %v516 = vpop.f32.mrf.mxu0
    %v517 = vadd.f32 0.0, %v516
    %518 = vdwg.mxu0
    %519 = vst [vmem:[#allocation7] sm:$0xff] %v515
    %520 = vst [vmem:[#allocation7 + $0x8] sm:$0xff] %v517
    // Predicated region
    $region18: #{softmax_markov_chain_forward.1} parent=1 // pred_check
      _
    $region19: #{softmax_markov_chain_forward.1} parent=1 // pred_check_branch
      %522 = sbr.rel (0) target = $region21
    $region20: #{softmax_markov_chain_forward.1} parent=1 // pred_region
      %s524 = ssub.s32 256, 256
      %525 = vsyncadd [#allocation4], %s524
      %s527 = sshll.u32 [#allocation7], 4
      %s528 = int_to_ptr.vmem [resolvable:$true] %s527
      %530 = dma.vmem_to_hbm [thread:$0]  %s528, 256, %s2, [#allocation4]
    $region21: #{softmax_markov_chain_forward.1} parent=1 // pred_fallthru
      _
    // Predicated region
    $region22: #{softmax_markov_chain_forward.1} parent=1 // pred_check
      _
    $region23: #{softmax_markov_chain_forward.1} parent=1 // pred_check_branch
      %532 = sbr.rel (0) target = $region25
    $region24: #{softmax_markov_chain_forward.1} parent=1 // pred_region
      %533 = dma.done [#allocation4], 256
    $region25: #{softmax_markov_chain_forward.1} parent=1 // pred_fallthru
      _
    %534 = vsyncpa [#allocation3], 1
    %535 = vsyncpa [#allocation6], 1
    %536 = vsyncpa [#allocation4], 1

</llo_original>
